<compile_context>
chip_gen: v6e
topology: v6e:2x2x1
jax: 0.10.0
libtpu: 0.0.40
codegen_flags: <defaults>
</compile_context>

<pallas_src>
import functools

import jax
import jax.numpy as jnp
from jax.experimental import pallas as pl
from jax.experimental.pallas import tpu as pltpu

IGNORE_INDEX = -100
_NEG = -1e30  # "minus infinity" that never yields inf/nan in exp/max math


def _orpo_token_logprob_kernel(
    pos_logits_ref, neg_logits_ref, pos_labels_ref, neg_labels_ref,   # inputs
    pos_out_ref, neg_out_ref,                                          # outputs
    pos_m, pos_l, pos_t, neg_m, neg_l, neg_t,                          # scratch
    *, tile_v, vocab_size):
    """Masked per-token target log-prob, accumulated online over vocab tiles.

    logits blocks: (tn, tt, tv) any float dtype (upcast to f32 in-kernel)
    labels blocks: (tn, tt) int32, ignore index = -100
    out blocks   : (tn, tt) f32  = mask * (logit[label] - logsumexp(logits))
    scratch      : (tn, tt) f32 running max / exp-sum / target logit (x2 sides)
    """
    v_idx = pl.program_id(2)
    v_num = pl.num_programs(2)
    v_off = v_idx * tile_v                     # scalar, shifts labels/bounds

    # LOCAL lane iota: computed once per grid step, shared by pos & neg sides.
    local_ids = jax.lax.broadcasted_iota(jnp.int32, pos_logits_ref.shape, 2)

    # Static: ragged vocab tiles need a lane mask; full tiles skip it entirely.
    needs_mask = (vocab_size % tile_v) != 0

    def one_side(logits_ref, labels_ref, out_ref, m_ref, l_ref, t_ref):
        @pl.when(v_idx == 0)
        def _():
            m_ref[...] = jnp.full(m_ref.shape, _NEG, dtype=jnp.float32)
            l_ref[...] = jnp.zeros(l_ref.shape, dtype=jnp.float32)
            t_ref[...] = jnp.zeros(t_ref.shape, dtype=jnp.float32)

        labels = labels_ref[...]                                   # (tn, tt)
        logits = logits_ref[...].astype(jnp.float32)               # (tn, tt, tv)

        if needs_mask:
            # Only the last tile is actually ragged; cheap scalar bound keeps
            # full tiles unmasked in value (all lanes < rem).
            rem = vocab_size - v_off
            logits = jnp.where(local_ids < rem, logits, _NEG)

        # Online (flash-style) logsumexp accumulation over vocab tiles.
        m_prev = m_ref[...]                                        # (tn, tt)
        m_new = jnp.maximum(m_prev, jnp.max(logits, axis=-1))
        l_ref[...] = (jnp.exp(m_prev - m_new) * l_ref[...]
                      + jnp.sum(jnp.exp(logits - m_new[..., None]), axis=-1))
        m_ref[...] = m_new

        # Target-logit "gather": compare against the locally shifted label.
        # ignore_index (-100) shifts negative and never matches a lane id.
        shifted = labels - v_off
        hit = local_ids == shifted[..., None]
        t_ref[...] += jnp.sum(jnp.where(hit, logits, 0.0), axis=-1)

        @pl.when(v_idx == v_num - 1)
        def _():
            lse = m_ref[...] + jnp.log(l_ref[...])                 # (tn, tt)
            mask = (labels != IGNORE_INDEX).astype(jnp.float32)
            out_ref[...] = (t_ref[...] - lse) * mask

    one_side(pos_logits_ref, pos_labels_ref, pos_out_ref, pos_m, pos_l, pos_t)
    one_side(neg_logits_ref, neg_labels_ref, neg_out_ref, neg_m, neg_l, neg_t)


@functools.lru_cache(maxsize=None)
def _vmem_capacity_bytes() -> int:
    """Physical VMEM of the attached TPU (safe fallback: assume 64 MiB)."""
    try:
        return int(pltpu.get_tpu_info().vmem_capacity_bytes)
    except Exception:
        return 64 * 1024 * 1024


def _pick_vmem_and_tile_v() -> tuple[int, int]:
    cap = _vmem_capacity_bytes()
    if cap >= 100 * 1024 * 1024:
        # v5e / v6e: 128 MiB physical -> big tiles amortize per-step overhead.
        return 96 * 1024 * 1024, 2048
    # v7x (64 MiB physical): budget the in-kernel f32 temporaries too.
    return 48 * 1024 * 1024, 1024


def _orpo_token_logprobs(pos_logits, neg_logits, pos_labels, neg_labels,
                         *, tile_t=128, tile_v=None):
    """Fused pos/neg per-token masked log-probs.  Returns two [B, T] f32."""
    B, T, V = pos_logits.shape
    assert neg_logits.shape == (B, T, V)

    vmem_limit, tv_auto = _pick_vmem_and_tile_v()
    if tile_v is None:
        tile_v = tv_auto

    # Tile choices that satisfy the (8, 128) block constraints:
    #  - batch tile: 8 if divisible, otherwise the full (small) batch dim.
    #    (On v7x with small B the seq axis supplies the parallel grid steps.)
    #  - seq tile:   full T when T <= tile_t, else tile_t (multiple of 128)
    #  - vocab tile: full V when V <= tile_v, else tile_v (multiple of 128)
    tn = 8 if (B % 8 == 0) else B
    tt = T if T <= tile_t else tile_t
    tv = V if V <= tile_v else tile_v
    if T > tile_t:
        assert tile_t % 128 == 0, "tile_t must be a multiple of 128 when T > tile_t"
    if V > tile_v:
        assert tile_v % 128 == 0, "tile_v must be a multiple of 128 when V > tile_v"

    grid = (pl.cdiv(B, tn), pl.cdiv(T, tt), pl.cdiv(V, tv))

    logits_spec = pl.BlockSpec((tn, tt, tv), lambda n, t, v: (n, t, v))
    labels_spec = pl.BlockSpec((tn, tt), lambda n, t, v: (n, t))
    out_spec = pl.BlockSpec((tn, tt), lambda n, t, v: (n, t))

    kernel = functools.partial(_orpo_token_logprob_kernel,
                               tile_v=tv, vocab_size=V)

    itemsize = jnp.dtype(pos_logits.dtype).itemsize
    cost = pl.CostEstimate(
        flops=int(10 * 2 * B * T * V),
        transcendentals=int(2 * B * T * V),
        bytes_accessed=int(2 * B * T * V * itemsize + 4 * B * T * 4),
    )

    pos_lp, neg_lp = pl.pallas_call(
        kernel,
        out_shape=(jax.ShapeDtypeStruct((B, T), jnp.float32),
                   jax.ShapeDtypeStruct((B, T), jnp.float32)),
        grid_spec=pltpu.PrefetchScalarGridSpec(
            num_scalar_prefetch=0,
            grid=grid,
            in_specs=[logits_spec, logits_spec, labels_spec, labels_spec],
            out_specs=[out_spec, out_spec],
            # (tn, tt) f32 accumulators: no trailing size-1 lane dim -> no
            # 128-lane padding waste (~24 KiB total instead of ~3 MiB).
            scratch_shapes=[pltpu.VMEM((tn, tt), jnp.float32)] * 6),
        compiler_params=pltpu.CompilerParams(
            dimension_semantics=("parallel", "parallel", "arbitrary"),
            vmem_limit_bytes=vmem_limit),
        cost_estimate=cost,
    )(pos_logits, neg_logits,
      pos_labels.astype(jnp.int32), neg_labels.astype(jnp.int32))
    return pos_lp, neg_lp


@functools.partial(jax.jit,
                   static_argnames=("alpha_orpo", "alpha_mle",
                                    "tile_t", "tile_v"))
def orpo_loss(policy_pos_logits, policy_neg_logits, pos_labels, neg_labels,
              *, alpha_orpo: float, alpha_mle: float,
              tile_t: int = 128, tile_v: int | None = None):
    """Mirrors ORPOLoss.forward. Returns (loss, metrics)."""
    # --- hot path: fused Pallas kernel, per-token masked target log-probs ---
    pos_tok_lp, neg_tok_lp = _orpo_token_logprobs(
        policy_pos_logits, policy_neg_logits, pos_labels, neg_labels,
        tile_t=tile_t, tile_v=tile_v)

    pos_mask = (pos_labels != IGNORE_INDEX).astype(jnp.float32)
    neg_mask = (neg_labels != IGNORE_INDEX).astype(jnp.float32)
    pos_cnt = pos_mask.sum(-1)
    neg_cnt = neg_mask.sum(-1)

    # MLE loss: per-token CE (= -logprob, ignored tokens contribute 0),
    # summed over seq, normalized by max(valid_len, 1), averaged over batch
    # (matches the reference forward, which uses reduction='none').
    mle_per_seq = (-pos_tok_lp).sum(-1)
    mle_loss = jnp.mean(mle_per_seq / jnp.maximum(pos_cnt, 1.0))

    # get_logprobs(): masked mean over sequence (no clamp, same as PyTorch).
    policy_pos_logp = pos_tok_lp.sum(-1) / pos_cnt
    policy_neg_logp = neg_tok_lp.sum(-1) / neg_cnt

    log_odds_n = policy_pos_logp - policy_neg_logp
    # 1e-05 epsilon matches the reference module exactly.
    log_odds_d = (jnp.log1p(1e-05 - jnp.exp(policy_pos_logp))
                  - jnp.log1p(1e-05 - jnp.exp(policy_neg_logp)))
    log_odds = log_odds_n - log_odds_d
    ratio = jnp.mean(jax.nn.log_sigmoid(log_odds))

    loss = mle_loss * alpha_mle - ratio * alpha_orpo

    metrics = {
        "orpo/pos_mean": jnp.mean(policy_pos_logp),
        "orpo/neg_mean": jnp.mean(policy_neg_logp),
        "orpo/log_odds_ratio": jnp.mean(ratio),
        "orpo/log_odds": jnp.mean(log_odds),
        "orpo/accuracy": jnp.mean(
            (policy_pos_logp > policy_neg_logp).astype(jnp.float32)),
    }
    return loss, metrics


def _ref_token_logprobs(logits, labels):
    """Pure-JAX reference of the in-kernel computation (for a sanity check)."""
    lp = jax.nn.log_softmax(logits.astype(jnp.float32), axis=-1)
    safe = jnp.where(labels == IGNORE_INDEX, 0, labels)
    tok = jnp.take_along_axis(lp, safe[..., None], axis=-1)[..., 0]
    return tok * (labels != IGNORE_INDEX).astype(jnp.float32)


if __name__ == "__main__":
    # ORPOLoss(alpha_orpo=1.0, alpha_mle=1.0, vocab_size=V) — no learned params.
    B, T, V = 2, 16, 512
    alpha_orpo, alpha_mle = 1.0, 1.0

    key = jax.random.PRNGKey(0)
    k1, k2, k3, k4 = jax.random.split(key, 4)
    # bf16 logits are the preferred input dtype — the kernel upcasts to f32.
    policy_pos_logits = jax.random.normal(k1, (B, T, V), dtype=jnp.bfloat16)
    policy_neg_logits = jax.random.normal(k2, (B, T, V), dtype=jnp.bfloat16)
    pos_labels = jax.random.randint(k3, (B, T), 0, V, dtype=jnp.int32)
    neg_labels = jax.random.randint(k4, (B, T), 0, V, dtype=jnp.int32)
    # mark the last two tokens of each sequence as padding (ignore_index)
    pos_labels = pos_labels.at[:, -2:].set(IGNORE_INDEX)
    neg_labels = neg_labels.at[:, -2:].set(IGNORE_INDEX)

    # Tiles chosen so the demo exercises the online logsumexp over the vocab
    # reduction axis while keeping all blocks (8,128)-legal:
    # tn=B=2, tt=T=16 (full dims), tv=128 -> grid = (1, 1, 4).
    loss, metrics = orpo_loss(
        policy_pos_logits, policy_neg_logits, pos_labels, neg_labels,
        alpha_orpo=alpha_orpo, alpha_mle=alpha_mle, tile_t=16, tile_v=128)
    jax.block_until_ready((loss, metrics))

    # Light numeric sanity check of the Pallas hot path against pure JAX.
    pos_lp, neg_lp = _orpo_token_logprobs(
        policy_pos_logits, policy_neg_logits, pos_labels, neg_labels,
        tile_t=16, tile_v=128)
    ref_pos = _ref_token_logprobs(policy_pos_logits, pos_labels)
    ref_neg = _ref_token_logprobs(policy_neg_logits, neg_labels)
    assert jnp.allclose(pos_lp, ref_pos, atol=2e-3, rtol=2e-3)
    assert jnp.allclose(neg_lp, ref_neg, atol=2e-3, rtol=2e-3)
    assert jnp.isfinite(loss)

    print("KERNEL_OK")
</pallas_src>

<mosaic_0001>
module attributes {stable_mosaic.version = 11 : i64} {
  func.func @_orpo_token_logprob_kernel(%arg0: i32, %arg1: i32, %arg2: i32, %arg3: memref<2x16x128xbf16, #tpu.memory_space<vmem>>, %arg4: memref<2x16x128xbf16, #tpu.memory_space<vmem>>, %arg5: memref<2x16xi32, #tpu.memory_space<vmem>>, %arg6: memref<2x16xi32, #tpu.memory_space<vmem>>, %arg7: memref<2x16xf32, #tpu.memory_space<vmem>>, %arg8: memref<2x16xf32, #tpu.memory_space<vmem>>, %arg9: memref<2x16xf32, #tpu.memory_space<vmem>>, %arg10: memref<2x16xf32, #tpu.memory_space<vmem>>, %arg11: memref<2x16xf32, #tpu.memory_space<vmem>>, %arg12: memref<2x16xf32, #tpu.memory_space<vmem>>, %arg13: memref<2x16xf32, #tpu.memory_space<vmem>>, %arg14: memref<2x16xf32, #tpu.memory_space<vmem>>) attributes {dimension_semantics = [#tpu.dimension_semantics<parallel>, #tpu.dimension_semantics<parallel>, #tpu.dimension_semantics<arbitrary>], iteration_bounds = array<i64: 1, 1, 4>, scalar_prefetch = 0 : i64, scratch_operands = 6 : i64, tpu.core_type = #tpu.core_type<tc>, window_params = [{transform_indices = @transform_0, window_bounds = array<i64: 2, 16, 128>}, {transform_indices = @transform_1, window_bounds = array<i64: 2, 16, 128>}, {transform_indices = @transform_2, window_bounds = array<i64: 2, 16>}, {transform_indices = @transform_3, window_bounds = array<i64: 2, 16>}, {transform_indices = @transform_4, window_bounds = array<i64: 2, 16>}, {transform_indices = @transform_5, window_bounds = array<i64: 2, 16>}]} {
    %c128_i32 = arith.constant 128 : i32
    %0 = arith.muli %arg2, %c128_i32 : i32
    %1 = tpu.iota {dimensions = array<i32: 2>} : vector<2x16x128xi32>
    %c0_i32 = arith.constant 0 : i32
    %2 = arith.cmpi eq, %arg2, %c0_i32 : i32
    %3 = arith.extui %2 : i1 to i32
    %c0_i32_0 = arith.constant 0 : i32
    %4 = arith.cmpi ne, %3, %c0_i32_0 : i32
    scf.if %4 {
      %cst_46 = arith.constant -1.000000e+30 : f32
      %72 = vector.broadcast %cst_46 : f32 to vector<2x16xf32>
      %c0_47 = arith.constant 0 : index
      %c0_48 = arith.constant 0 : index
      %73 = vector.load %arg9[%c0_47, %c0_48] : memref<2x16xf32, #tpu.memory_space<vmem>>, vector<2x16xf32>
      tpu.vector_store %arg9[%c0_47, %c0_48], %72 {strides = array<i32>} : memref<2x16xf32, #tpu.memory_space<vmem>>, vector<2x16xf32>,
      %cst_49 = arith.constant 0.000000e+00 : f32
      %74 = vector.broadcast %cst_49 : f32 to vector<2x16xf32>
      %c0_50 = arith.constant 0 : index
      %c0_51 = arith.constant 0 : index
      %75 = vector.load %arg10[%c0_50, %c0_51] : memref<2x16xf32, #tpu.memory_space<vmem>>, vector<2x16xf32>
      tpu.vector_store %arg10[%c0_50, %c0_51], %74 {strides = array<i32>} : memref<2x16xf32, #tpu.memory_space<vmem>>, vector<2x16xf32>,
      %cst_52 = arith.constant 0.000000e+00 : f32
      %76 = vector.broadcast %cst_52 : f32 to vector<2x16xf32>
      %c0_53 = arith.constant 0 : index
      %c0_54 = arith.constant 0 : index
      %77 = vector.load %arg11[%c0_53, %c0_54] : memref<2x16xf32, #tpu.memory_space<vmem>>, vector<2x16xf32>
      tpu.vector_store %arg11[%c0_53, %c0_54], %76 {strides = array<i32>} : memref<2x16xf32, #tpu.memory_space<vmem>>, vector<2x16xf32>,
    } else {
    }
    %c0 = arith.constant 0 : index
    %c0_1 = arith.constant 0 : index
    %5 = vector.load %arg5[%c0, %c0_1] : memref<2x16xi32, #tpu.memory_space<vmem>>, vector<2x16xi32>
    %c0_2 = arith.constant 0 : index
    %c0_3 = arith.constant 0 : index
    %c0_4 = arith.constant 0 : index
    %6 = vector.load %arg3[%c0_2, %c0_3, %c0_4] : memref<2x16x128xbf16, #tpu.memory_space<vmem>>, vector<2x16x128xbf16>
    %7 = arith.extf %6 : vector<2x16x128xbf16> to vector<2x16x128xf32>
    %c0_5 = arith.constant 0 : index
    %c0_6 = arith.constant 0 : index
    %8 = vector.load %arg9[%c0_5, %c0_6] : memref<2x16xf32, #tpu.memory_space<vmem>>, vector<2x16xf32>
    %cst = arith.constant dense<0xFF800000> : vector<2x16xf32>
    %9 = vector.multi_reduction <maximumf>, %7, %cst [2] : vector<2x16x128xf32> to vector<2x16xf32>
    %10 = arith.maximumf %8, %9 : vector<2x16xf32>
    %11 = arith.subf %8, %10 : vector<2x16xf32>
    %12 = math.exp %11 : vector<2x16xf32>
    %c0_7 = arith.constant 0 : index
    %c0_8 = arith.constant 0 : index
    %13 = vector.load %arg10[%c0_7, %c0_8] : memref<2x16xf32, #tpu.memory_space<vmem>>, vector<2x16xf32>
    %14 = arith.mulf %12, %13 : vector<2x16xf32>
    %15 = vector.shape_cast %10 : vector<2x16xf32> to vector<2x16x1xf32>
    %16 = vector.broadcast %15 : vector<2x16x1xf32> to vector<2x16x128xf32>
    %17 = arith.subf %7, %16 : vector<2x16x128xf32>
    %18 = math.exp %17 : vector<2x16x128xf32>
    %cst_9 = arith.constant dense<0.000000e+00> : vector<2x16xf32>
    %19 = vector.multi_reduction <add>, %18, %cst_9 [2] : vector<2x16x128xf32> to vector<2x16xf32>
    %20 = arith.addf %14, %19 : vector<2x16xf32>
    %c0_10 = arith.constant 0 : index
    %c0_11 = arith.constant 0 : index
    %21 = vector.load %arg10[%c0_10, %c0_11] : memref<2x16xf32, #tpu.memory_space<vmem>>, vector<2x16xf32>
    tpu.vector_store %arg10[%c0_10, %c0_11], %20 {strides = array<i32>} : memref<2x16xf32, #tpu.memory_space<vmem>>, vector<2x16xf32>,
    %c0_12 = arith.constant 0 : index
    %c0_13 = arith.constant 0 : index
    %22 = vector.load %arg9[%c0_12, %c0_13] : memref<2x16xf32, #tpu.memory_space<vmem>>, vector<2x16xf32>
    tpu.vector_store %arg9[%c0_12, %c0_13], %10 {strides = array<i32>} : memref<2x16xf32, #tpu.memory_space<vmem>>, vector<2x16xf32>,
    %23 = vector.broadcast %0 : i32 to vector<2x16xi32>
    %24 = arith.subi %5, %23 : vector<2x16xi32>
    %25 = vector.shape_cast %24 : vector<2x16xi32> to vector<2x16x1xi32>
    %26 = vector.broadcast %25 : vector<2x16x1xi32> to vector<2x16x128xi32>
    %27 = arith.cmpi eq, %1, %26 : vector<2x16x128xi32>
    %c0_14 = arith.constant 0 : index
    %c0_15 = arith.constant 0 : index
    %28 = vector.load %arg11[%c0_14, %c0_15] : memref<2x16xf32, #tpu.memory_space<vmem>>, vector<2x16xf32>
    %cst_16 = arith.constant 0.000000e+00 : f32
    %29 = vector.broadcast %cst_16 : f32 to vector<2x16x128xf32>
    %30 = arith.select %27, %7, %29 : vector<2x16x128xi1>, vector<2x16x128xf32>
    %cst_17 = arith.constant dense<0.000000e+00> : vector<2x16xf32>
    %31 = vector.multi_reduction <add>, %30, %cst_17 [2] : vector<2x16x128xf32> to vector<2x16xf32>
    %32 = arith.addf %28, %31 : vector<2x16xf32>
    %c0_18 = arith.constant 0 : index
    %c0_19 = arith.constant 0 : index
    %33 = vector.load %arg11[%c0_18, %c0_19] : memref<2x16xf32, #tpu.memory_space<vmem>>, vector<2x16xf32>
    tpu.vector_store %arg11[%c0_18, %c0_19], %32 {strides = array<i32>} : memref<2x16xf32, #tpu.memory_space<vmem>>, vector<2x16xf32>,
    %c3_i32 = arith.constant 3 : i32
    %34 = arith.cmpi eq, %arg2, %c3_i32 : i32
    %35 = arith.extui %34 : i1 to i32
    %c0_i32_20 = arith.constant 0 : i32
    %36 = arith.cmpi ne, %35, %c0_i32_20 : i32
    scf.if %36 {
      %c0_46 = arith.constant 0 : index
      %c0_47 = arith.constant 0 : index
      %72 = vector.load %arg9[%c0_46, %c0_47] : memref<2x16xf32, #tpu.memory_space<vmem>>, vector<2x16xf32>
      %c0_48 = arith.constant 0 : index
      %c0_49 = arith.constant 0 : index
      %73 = vector.load %arg10[%c0_48, %c0_49] : memref<2x16xf32, #tpu.memory_space<vmem>>, vector<2x16xf32>
      %74 = math.log %73 : vector<2x16xf32>
      %75 = arith.addf %72, %74 : vector<2x16xf32>
      %c-100_i32 = arith.constant -100 : i32
      %76 = vector.broadcast %c-100_i32 : i32 to vector<2x16xi32>
      %77 = arith.cmpi ne, %5, %76 : vector<2x16xi32>
      %78 = arith.extui %77 : vector<2x16xi1> to vector<2x16xi32>
      %79 = arith.sitofp %78 : vector<2x16xi32> to vector<2x16xf32>
      %c0_50 = arith.constant 0 : index
      %c0_51 = arith.constant 0 : index
      %80 = vector.load %arg11[%c0_50, %c0_51] : memref<2x16xf32, #tpu.memory_space<vmem>>, vector<2x16xf32>
      %81 = arith.subf %80, %75 : vector<2x16xf32>
      %82 = arith.mulf %81, %79 : vector<2x16xf32>
      %c0_52 = arith.constant 0 : index
      %c0_53 = arith.constant 0 : index
      %83 = vector.load %arg7[%c0_52, %c0_53] : memref<2x16xf32, #tpu.memory_space<vmem>>, vector<2x16xf32>
      tpu.vector_store %arg7[%c0_52, %c0_53], %82 {strides = array<i32>} : memref<2x16xf32, #tpu.memory_space<vmem>>, vector<2x16xf32>,
    } else {
    }
    %c0_i32_21 = arith.constant 0 : i32
    %37 = arith.cmpi eq, %arg2, %c0_i32_21 : i32
    %38 = arith.extui %37 : i1 to i32
    %c0_i32_22 = arith.constant 0 : i32
    %39 = arith.cmpi ne, %38, %c0_i32_22 : i32
    scf.if %39 {
      %cst_46 = arith.constant -1.000000e+30 : f32
      %72 = vector.broadcast %cst_46 : f32 to vector<2x16xf32>
      %c0_47 = arith.constant 0 : index
      %c0_48 = arith.constant 0 : index
      %73 = vector.load %arg12[%c0_47, %c0_48] : memref<2x16xf32, #tpu.memory_space<vmem>>, vector<2x16xf32>
      tpu.vector_store %arg12[%c0_47, %c0_48], %72 {strides = array<i32>} : memref<2x16xf32, #tpu.memory_space<vmem>>, vector<2x16xf32>,
      %cst_49 = arith.constant 0.000000e+00 : f32
      %74 = vector.broadcast %cst_49 : f32 to vector<2x16xf32>
      %c0_50 = arith.constant 0 : index
      %c0_51 = arith.constant 0 : index
      %75 = vector.load %arg13[%c0_50, %c0_51] : memref<2x16xf32, #tpu.memory_space<vmem>>, vector<2x16xf32>
      tpu.vector_store %arg13[%c0_50, %c0_51], %74 {strides = array<i32>} : memref<2x16xf32, #tpu.memory_space<vmem>>, vector<2x16xf32>,
      %cst_52 = arith.constant 0.000000e+00 : f32
      %76 = vector.broadcast %cst_52 : f32 to vector<2x16xf32>
      %c0_53 = arith.constant 0 : index
      %c0_54 = arith.constant 0 : index
      %77 = vector.load %arg14[%c0_53, %c0_54] : memref<2x16xf32, #tpu.memory_space<vmem>>, vector<2x16xf32>
      tpu.vector_store %arg14[%c0_53, %c0_54], %76 {strides = array<i32>} : memref<2x16xf32, #tpu.memory_space<vmem>>, vector<2x16xf32>,
    } else {
    }
    %c0_23 = arith.constant 0 : index
    %c0_24 = arith.constant 0 : index
    %40 = vector.load %arg6[%c0_23, %c0_24] : memref<2x16xi32, #tpu.memory_space<vmem>>, vector<2x16xi32>
    %c0_25 = arith.constant 0 : index
    %c0_26 = arith.constant 0 : index
    %c0_27 = arith.constant 0 : index
    %41 = vector.load %arg4[%c0_25, %c0_26, %c0_27] : memref<2x16x128xbf16, #tpu.memory_space<vmem>>, vector<2x16x128xbf16>
    %42 = arith.extf %41 : vector<2x16x128xbf16> to vector<2x16x128xf32>
    %c0_28 = arith.constant 0 : index
    %c0_29 = arith.constant 0 : index
    %43 = vector.load %arg12[%c0_28, %c0_29] : memref<2x16xf32, #tpu.memory_space<vmem>>, vector<2x16xf32>
    %cst_30 = arith.constant dense<0xFF800000> : vector<2x16xf32>
    %44 = vector.multi_reduction <maximumf>, %42, %cst_30 [2] : vector<2x16x128xf32> to vector<2x16xf32>
    %45 = arith.maximumf %43, %44 : vector<2x16xf32>
    %46 = arith.subf %43, %45 : vector<2x16xf32>
    %47 = math.exp %46 : vector<2x16xf32>
    %c0_31 = arith.constant 0 : index
    %c0_32 = arith.constant 0 : index
    %48 = vector.load %arg13[%c0_31, %c0_32] : memref<2x16xf32, #tpu.memory_space<vmem>>, vector<2x16xf32>
    %49 = arith.mulf %47, %48 : vector<2x16xf32>
    %50 = vector.shape_cast %45 : vector<2x16xf32> to vector<2x16x1xf32>
    %51 = vector.broadcast %50 : vector<2x16x1xf32> to vector<2x16x128xf32>
    %52 = arith.subf %42, %51 : vector<2x16x128xf32>
    %53 = math.exp %52 : vector<2x16x128xf32>
    %cst_33 = arith.constant dense<0.000000e+00> : vector<2x16xf32>
    %54 = vector.multi_reduction <add>, %53, %cst_33 [2] : vector<2x16x128xf32> to vector<2x16xf32>
    %55 = arith.addf %49, %54 : vector<2x16xf32>
    %c0_34 = arith.constant 0 : index
    %c0_35 = arith.constant 0 : index
    %56 = vector.load %arg13[%c0_34, %c0_35] : memref<2x16xf32, #tpu.memory_space<vmem>>, vector<2x16xf32>
    tpu.vector_store %arg13[%c0_34, %c0_35], %55 {strides = array<i32>} : memref<2x16xf32, #tpu.memory_space<vmem>>, vector<2x16xf32>,
    %c0_36 = arith.constant 0 : index
    %c0_37 = arith.constant 0 : index
    %57 = vector.load %arg12[%c0_36, %c0_37] : memref<2x16xf32, #tpu.memory_space<vmem>>, vector<2x16xf32>
    tpu.vector_store %arg12[%c0_36, %c0_37], %45 {strides = array<i32>} : memref<2x16xf32, #tpu.memory_space<vmem>>, vector<2x16xf32>,
    %58 = vector.broadcast %0 : i32 to vector<2x16xi32>
    %59 = arith.subi %40, %58 : vector<2x16xi32>
    %60 = vector.shape_cast %59 : vector<2x16xi32> to vector<2x16x1xi32>
    %61 = vector.broadcast %60 : vector<2x16x1xi32> to vector<2x16x128xi32>
    %62 = arith.cmpi eq, %1, %61 : vector<2x16x128xi32>
    %c0_38 = arith.constant 0 : index
    %c0_39 = arith.constant 0 : index
    %63 = vector.load %arg14[%c0_38, %c0_39] : memref<2x16xf32, #tpu.memory_space<vmem>>, vector<2x16xf32>
    %cst_40 = arith.constant 0.000000e+00 : f32
    %64 = vector.broadcast %cst_40 : f32 to vector<2x16x128xf32>
    %65 = arith.select %62, %42, %64 : vector<2x16x128xi1>, vector<2x16x128xf32>
    %cst_41 = arith.constant dense<0.000000e+00> : vector<2x16xf32>
    %66 = vector.multi_reduction <add>, %65, %cst_41 [2] : vector<2x16x128xf32> to vector<2x16xf32>
    %67 = arith.addf %63, %66 : vector<2x16xf32>
    %c0_42 = arith.constant 0 : index
    %c0_43 = arith.constant 0 : index
    %68 = vector.load %arg14[%c0_42, %c0_43] : memref<2x16xf32, #tpu.memory_space<vmem>>, vector<2x16xf32>
    tpu.vector_store %arg14[%c0_42, %c0_43], %67 {strides = array<i32>} : memref<2x16xf32, #tpu.memory_space<vmem>>, vector<2x16xf32>,
    %c3_i32_44 = arith.constant 3 : i32
    %69 = arith.cmpi eq, %arg2, %c3_i32_44 : i32
    %70 = arith.extui %69 : i1 to i32
    %c0_i32_45 = arith.constant 0 : i32
    %71 = arith.cmpi ne, %70, %c0_i32_45 : i32
    scf.if %71 {
      %c0_46 = arith.constant 0 : index
      %c0_47 = arith.constant 0 : index
      %72 = vector.load %arg12[%c0_46, %c0_47] : memref<2x16xf32, #tpu.memory_space<vmem>>, vector<2x16xf32>
      %c0_48 = arith.constant 0 : index
      %c0_49 = arith.constant 0 : index
      %73 = vector.load %arg13[%c0_48, %c0_49] : memref<2x16xf32, #tpu.memory_space<vmem>>, vector<2x16xf32>
      %74 = math.log %73 : vector<2x16xf32>
      %75 = arith.addf %72, %74 : vector<2x16xf32>
      %c-100_i32 = arith.constant -100 : i32
      %76 = vector.broadcast %c-100_i32 : i32 to vector<2x16xi32>
      %77 = arith.cmpi ne, %40, %76 : vector<2x16xi32>
      %78 = arith.extui %77 : vector<2x16xi1> to vector<2x16xi32>
      %79 = arith.sitofp %78 : vector<2x16xi32> to vector<2x16xf32>
      %c0_50 = arith.constant 0 : index
      %c0_51 = arith.constant 0 : index
      %80 = vector.load %arg14[%c0_50, %c0_51] : memref<2x16xf32, #tpu.memory_space<vmem>>, vector<2x16xf32>
      %81 = arith.subf %80, %75 : vector<2x16xf32>
      %82 = arith.mulf %81, %79 : vector<2x16xf32>
      %c0_52 = arith.constant 0 : index
      %c0_53 = arith.constant 0 : index
      %83 = vector.load %arg8[%c0_52, %c0_53] : memref<2x16xf32, #tpu.memory_space<vmem>>, vector<2x16xf32>
      tpu.vector_store %arg8[%c0_52, %c0_53], %82 {strides = array<i32>} : memref<2x16xf32, #tpu.memory_space<vmem>>, vector<2x16xf32>,
    } else {
    }
    return
  }
  func.func @transform_0(%arg0: i32, %arg1: i32, %arg2: i32) -> (i32, i32, i32) {
    %c0_i32 = arith.constant 0 : i32
    return %arg0, %arg1, %arg2 : i32, i32, i32
  }
  func.func @transform_1(%arg0: i32, %arg1: i32, %arg2: i32) -> (i32, i32, i32) {
    %c0_i32 = arith.constant 0 : i32
    return %arg0, %arg1, %arg2 : i32, i32, i32
  }
  func.func @transform_2(%arg0: i32, %arg1: i32, %arg2: i32) -> (i32, i32) {
    %c0_i32 = arith.constant 0 : i32
    return %arg0, %arg1 : i32, i32
  }
  func.func @transform_3(%arg0: i32, %arg1: i32, %arg2: i32) -> (i32, i32) {
    %c0_i32 = arith.constant 0 : i32
    return %arg0, %arg1 : i32, i32
  }
  func.func @transform_4(%arg0: i32, %arg1: i32, %arg2: i32) -> (i32, i32) {
    %c0_i32 = arith.constant 0 : i32
    return %arg0, %arg1 : i32, i32
  }
  func.func @transform_5(%arg0: i32, %arg1: i32, %arg2: i32) -> (i32, i32) {
    %c0_i32 = arith.constant 0 : i32
    return %arg0, %arg1 : i32, i32
  }
}

</mosaic_0001>

<llo_original>
// kernel: orpo_loss.1
$region0: #{orpo_loss.1}
  #allocation0 [shape = 'u32[]', space=smem, size = 0x4, offset = 0x4, fixed_abs, tag = 'smem constant byte address 0x4 - core index']
  #allocation1 [shape = 'u32[144,128]{1,0:T(1,128)}', space=vmem, size = 0x12000, scoped, tag = 'internal scratch']
  #allocation2 [shape = 'f32[2,16]{1,0:T(2,128)}', space=vmem, size = 0x400, scoped, tag = 'scratch operand']
  #allocation3 [shape = 'f32[2,16]{1,0:T(2,128)}', space=vmem, size = 0x400, scoped, tag = 'scratch operand']
  #allocation4 [shape = 'f32[2,16]{1,0:T(2,128)}', space=vmem, size = 0x400, scoped, tag = 'scratch operand']
  #allocation5 [shape = 'f32[2,16]{1,0:T(2,128)}', space=vmem, size = 0x400, scoped, tag = 'scratch operand']
  #allocation6 [shape = 'f32[2,16]{1,0:T(2,128)}', space=vmem, size = 0x400, scoped, tag = 'scratch operand']
  #allocation7 [shape = 'f32[2,16]{1,0:T(2,128)}', space=vmem, size = 0x400, scoped, tag = 'scratch operand']
  %s0 = inlined_call_operand.hbm [shape: bf16[2,16,512], index: 0, kind: input, shape index: {}]
  %s1 = inlined_call_operand.hbm [shape: bf16[2,16,512], index: 1, kind: input, shape index: {}]
  %s2 = inlined_call_operand.vmem [shape: s32[2,16], index: 2, kind: input, shape index: {}]
  %s3 = inlined_call_operand.vmem [shape: s32[2,16], index: 3, kind: input, shape index: {}]
  %s4 = inlined_call_operand.vmem [shape: f32[2,16], index: 4, kind: output, shape index: {0}]
  %s5 = inlined_call_operand.vmem [shape: f32[2,16], index: 5, kind: output, shape index: {1}]
  %6 = xla_tuple %s4, %s5
  %s7 = sld [smem:[#allocation0]]
  $region81: #{orpo_loss.1} parent=0
    _
  %s9 = ssub.s32 1, %s7
  %s10 = scalar_select 0, %s9, %s7
  $region1: #{orpo_loss.1} parent=0
    #allocation8 [shape = 'u8[16384]{0}', space=vmem, size = 0x4000, scoped, tag = 'input window, operand 0']
    #allocation9 [shape = 's32[2]{0}', space=sflag, size = 0x8, scoped, tag = 'scoped memory for orpo_loss.1']
    #allocation10 [shape = 'u8[16384]{0}', space=vmem, size = 0x4000, scoped, tag = 'input window, operand 1']
    #allocation11 [shape = 's32[2]{0}', space=sflag, size = 0x8, scoped, tag = 'scoped memory for orpo_loss.1']
    %11 = vsyncpa [#allocation9], 0
    %s12 = scalar_lea.sflag [#allocation9], 1
    %13 = vsyncpa %s12, 0
    %14 = vsyncpa [#allocation11], 0
    %s15 = scalar_lea.sflag [#allocation11], 1
    %16 = vsyncpa %s15, 0
    loop: start=0, step=1, limit=6
    $region2: #{orpo_loss.1} parent=1 // loop_pre_header
      _
    $region3: #{orpo_loss.1} parent=1 // loop_header
      %s18 = sphi 0, %s22
      %p19 = scmp.ge.s32.totalorder %s18, 6
      %s25 = sphi 0, %s44
      %s26 = sphi 0, %s40
      %s27 = sphi 0, %s36
      %s28 = sphi 0, %s25
      %s29 = sphi 0, %s26
      %s30 = sphi 0, %s27
      %s31 = sphi 0, %s28
      %s32 = sphi 0, %s29
      %s33 = sphi 0, %s30
      %s51 = sphi 0, %s53
      %s54 = sphi 0, %s51
      %s55 = sphi 0, %s54
      %s71 = sphi 0, %s55
      %s81 = sphi 0, %s83
      %s84 = sphi 0, %s81
      %s85 = sphi 0, %s84
      %s101 = sphi 0, %s85
      %s109 = sphi 0, %s111
      %s112 = sphi 0, %s109
      %s113 = sphi 0, %s112
      %s129 = sphi 0, %s113
      %s137 = sphi 0, %s139
      %s140 = sphi 0, %s137
      %s141 = sphi 0, %s140
      %s157 = sphi 0, %s141
      %s165 = sphi 0, %s167
      %s168 = sphi 0, %s165
      %s169 = sphi 0, %s168
      %s185 = sphi 0, %s169
      %s193 = sphi 0, %s195
      %s196 = sphi 0, %s193
      %s197 = sphi 0, %s196
      %s213 = sphi 0, %s197
    $region4: #{orpo_loss.1} parent=1 // loop_header_branch
      %21 = sbr.rel (%p19) target = $region8
    $region5: #{orpo_loss.1} parent=1 // loop_body
      %s23 = ssub.s32 %s18, 1
      %s24 = ssub.s32 %s18, 2
      %s34 = sadd.s32 1, %s27
      %p35 = scmp.ge.s32.totalorder %s34, 4
      %s36 = scalar_select %p35, 0, %s34
      %s37 = sadd.s32 1, %s26
      %s38 = scalar_select %p35, %s37, %s26
      %p39 = scmp.ge.s32.totalorder %s38, 1
      %s40 = scalar_select %p39, 0, %s38
      %s41 = sadd.s32 1, %s25
      %s42 = scalar_select %p39, %s41, %s25
      %p43 = scmp.ge.s32.totalorder %s42, 1
      %s44 = scalar_select %p43, 0, %s42
      %s45 = ssub.s32 %s25, %s44
      %s46 = ssub.s32 %s26, %s40
      %s47 = sor.u32 %s45, %s46
      %s48 = ssub.s32 %s27, %s36
      %s49 = sor.u32 %s47, %s48
      %p50 = scmp.eq.s32.totalorder %s49, 0
      %s52 = sadd.s32 %s51, 1
      %s53 = scalar_select %p50, %s51, %s52
      %p56 = pneg %p50
      %p57 = scmp.eq.s32.totalorder %s18, 3
      %p58 = por %p56, %p57
      %p59 = scmp.ne.s32.totalorder %s51, %s54
      %p60 = scmp.eq.s32.totalorder %s18, 0
      %p61 = por %p59, %p60
      %p62 = scmp.ne.s32.totalorder %s51, %s54
      %p63 = scmp.eq.s32.totalorder %s23, 3
      %p64 = por %p62, %p63
      %p65 = scmp.ne.s32.totalorder %s54, %s55
      %p66 = scmp.eq.s32.totalorder %s23, 0
      %p67 = por %p65, %p66
      %p68 = scmp.ne.s32.totalorder %s54, %s55
      %p69 = scmp.eq.s32.totalorder %s24, 3
      %p70 = por %p68, %p69
      %p72 = scmp.ne.s32.totalorder %s55, %s71
      %p73 = scmp.eq.s32.totalorder %s24, 0
      %p74 = por %p72, %p73
      %s75 = ssub.s32 %s25, %s44
      %s76 = ssub.s32 %s26, %s40
      %s77 = sor.u32 %s75, %s76
      %s78 = ssub.s32 %s27, %s36
      %s79 = sor.u32 %s77, %s78
      %p80 = scmp.eq.s32.totalorder %s79, 0
      %s82 = sadd.s32 %s81, 1
      %s83 = scalar_select %p80, %s81, %s82
      %p86 = pneg %p80
      %p87 = scmp.eq.s32.totalorder %s18, 3
      %p88 = por %p86, %p87
      %p89 = scmp.ne.s32.totalorder %s81, %s84
      %p90 = scmp.eq.s32.totalorder %s18, 0
      %p91 = por %p89, %p90
      %p92 = scmp.ne.s32.totalorder %s81, %s84
      %p93 = scmp.eq.s32.totalorder %s23, 3
      %p94 = por %p92, %p93
      %p95 = scmp.ne.s32.totalorder %s84, %s85
      %p96 = scmp.eq.s32.totalorder %s23, 0
      %p97 = por %p95, %p96
      %p98 = scmp.ne.s32.totalorder %s84, %s85
      %p99 = scmp.eq.s32.totalorder %s24, 3
      %p100 = por %p98, %p99
      %p102 = scmp.ne.s32.totalorder %s85, %s101
      %p103 = scmp.eq.s32.totalorder %s24, 0
      %p104 = por %p102, %p103
      %s105 = ssub.s32 %s25, %s44
      %s106 = ssub.s32 %s26, %s40
      %s107 = sor.u32 %s105, %s106
      %p108 = scmp.eq.s32.totalorder %s107, 0
      %s110 = sadd.s32 %s109, 1
      %s111 = scalar_select %p108, %s109, %s110
      %p114 = pneg %p108
      %p115 = scmp.eq.s32.totalorder %s18, 3
      %p116 = por %p114, %p115
      %p117 = scmp.ne.s32.totalorder %s109, %s112
      %p118 = scmp.eq.s32.totalorder %s18, 0
      %p119 = por %p117, %p118
      %p120 = scmp.ne.s32.totalorder %s109, %s112
      %p121 = scmp.eq.s32.totalorder %s23, 3
      %p122 = por %p120, %p121
      %p123 = scmp.ne.s32.totalorder %s112, %s113
      %p124 = scmp.eq.s32.totalorder %s23, 0
      %p125 = por %p123, %p124
      %p126 = scmp.ne.s32.totalorder %s112, %s113
      %p127 = scmp.eq.s32.totalorder %s24, 3
      %p128 = por %p126, %p127
      %p130 = scmp.ne.s32.totalorder %s113, %s129
      %p131 = scmp.eq.s32.totalorder %s24, 0
      %p132 = por %p130, %p131
      %s133 = ssub.s32 %s25, %s44
      %s134 = ssub.s32 %s26, %s40
      %s135 = sor.u32 %s133, %s134
      %p136 = scmp.eq.s32.totalorder %s135, 0
      %s138 = sadd.s32 %s137, 1
      %s139 = scalar_select %p136, %s137, %s138
      %p142 = pneg %p136
      %p143 = scmp.eq.s32.totalorder %s18, 3
      %p144 = por %p142, %p143
      %p145 = scmp.ne.s32.totalorder %s137, %s140
      %p146 = scmp.eq.s32.totalorder %s18, 0
      %p147 = por %p145, %p146
      %p148 = scmp.ne.s32.totalorder %s137, %s140
      %p149 = scmp.eq.s32.totalorder %s23, 3
      %p150 = por %p148, %p149
      %p151 = scmp.ne.s32.totalorder %s140, %s141
      %p152 = scmp.eq.s32.totalorder %s23, 0
      %p153 = por %p151, %p152
      %p154 = scmp.ne.s32.totalorder %s140, %s141
      %p155 = scmp.eq.s32.totalorder %s24, 3
      %p156 = por %p154, %p155
      %p158 = scmp.ne.s32.totalorder %s141, %s157
      %p159 = scmp.eq.s32.totalorder %s24, 0
      %p160 = por %p158, %p159
      %s161 = ssub.s32 %s25, %s44
      %s162 = ssub.s32 %s26, %s40
      %s163 = sor.u32 %s161, %s162
      %p164 = scmp.eq.s32.totalorder %s163, 0
      %s166 = sadd.s32 %s165, 1
      %s167 = scalar_select %p164, %s165, %s166
      %p170 = pneg %p164
      %p171 = scmp.eq.s32.totalorder %s18, 3
      %p172 = por %p170, %p171
      %p173 = scmp.ne.s32.totalorder %s165, %s168
      %p174 = scmp.eq.s32.totalorder %s18, 0
      %p175 = por %p173, %p174
      %p176 = scmp.ne.s32.totalorder %s165, %s168
      %p177 = scmp.eq.s32.totalorder %s23, 3
      %p178 = por %p176, %p177
      %p179 = scmp.ne.s32.totalorder %s168, %s169
      %p180 = scmp.eq.s32.totalorder %s23, 0
      %p181 = por %p179, %p180
      %p182 = scmp.ne.s32.totalorder %s168, %s169
      %p183 = scmp.eq.s32.totalorder %s24, 3
      %p184 = por %p182, %p183
      %p186 = scmp.ne.s32.totalorder %s169, %s185
      %p187 = scmp.eq.s32.totalorder %s24, 0
      %p188 = por %p186, %p187
      %s189 = ssub.s32 %s25, %s44
      %s190 = ssub.s32 %s26, %s40
      %s191 = sor.u32 %s189, %s190
      %p192 = scmp.eq.s32.totalorder %s191, 0
      %s194 = sadd.s32 %s193, 1
      %s195 = scalar_select %p192, %s193, %s194
      %p198 = pneg %p192
      %p199 = scmp.eq.s32.totalorder %s18, 3
      %p200 = por %p198, %p199
      %p201 = scmp.ne.s32.totalorder %s193, %s196
      %p202 = scmp.eq.s32.totalorder %s18, 0
      %p203 = por %p201, %p202
      %p204 = scmp.ne.s32.totalorder %s193, %s196
      %p205 = scmp.eq.s32.totalorder %s23, 3
      %p206 = por %p204, %p205
      %p207 = scmp.ne.s32.totalorder %s196, %s197
      %p208 = scmp.eq.s32.totalorder %s23, 0
      %p209 = por %p207, %p208
      %p210 = scmp.ne.s32.totalorder %s196, %s197
      %p211 = scmp.eq.s32.totalorder %s24, 3
      %p212 = por %p210, %p211
      %p214 = scmp.ne.s32.totalorder %s197, %s213
      %p215 = scmp.eq.s32.totalorder %s24, 0
      %p216 = por %p214, %p215
      %p217 = scmp.le.s32.totalorder 1, %s18
      %p218 = scmp.lt.s32.totalorder %s18, 5
      %p219 = pnand %p217, %p218
      %p220 = pneg %p219
      // Predicated region
      $region9: #{orpo_loss.1} parent=5 // pred_check
        _
      $region10: #{orpo_loss.1} parent=5 // pred_check_branch
        %222 = sbr.rel (%p219) target = $region12
      $region11: #{orpo_loss.1} parent=5 // pred_region
        %s223 = ssub.s32 %s18, 1
        // Predicated region
        $region13: #{orpo_loss.1} parent=11 // pred_check
          %p224 = pneg %p125
        $region14: #{orpo_loss.1} parent=11 // pred_check_branch
          %226 = sbr.rel (%p224) target = $region16
        $region15: #{orpo_loss.1} parent=11 // pred_region
          %p227 = scmp.lt.s32.totalorder %s28, 0
          %s228 = scalar_select %p227, %s28, 0
          %p229 = scmp.lt.s32.totalorder %s29, 0
          %s230 = scalar_select %p229, %s29, 0
          %s231 = sadd.s32 %s230, %s228
          %s232 = smul.addr %s231, 2
          %s233 = scalar_lea.vmem %s2, %s232
        $region16: #{orpo_loss.1} parent=11 // pred_fallthru
          _
        // Predicated region
        $region17: #{orpo_loss.1} parent=11 // pred_check
          %p234 = pneg %p153
        $region18: #{orpo_loss.1} parent=11 // pred_check_branch
          %236 = sbr.rel (%p234) target = $region20
        $region19: #{orpo_loss.1} parent=11 // pred_region
          %p237 = scmp.lt.s32.totalorder %s28, 0
          %s238 = scalar_select %p237, %s28, 0
          %p239 = scmp.lt.s32.totalorder %s29, 0
          %s240 = scalar_select %p239, %s29, 0
          %s241 = sadd.s32 %s240, %s238
          %s242 = smul.addr %s241, 2
          %s243 = scalar_lea.vmem %s3, %s242
        $region20: #{orpo_loss.1} parent=11 // pred_fallthru
          _
      $region12: #{orpo_loss.1} parent=5 // pred_fallthru
        _
      %p244 = scmp.lt.s32.totalorder %s18, 4
      // Predicated region
      $region21: #{orpo_loss.1} parent=5 // pred_check
        %p245 = pneg %p244
      $region22: #{orpo_loss.1} parent=5 // pred_check_branch
        %247 = sbr.rel (%p245) target = $region24
      $region23: #{orpo_loss.1} parent=5 // pred_region
        // Predicated region
        $region25: #{orpo_loss.1} parent=23 // pred_check
          %p248 = pneg %p61
        $region26: #{orpo_loss.1} parent=23 // pred_check_branch
          %250 = sbr.rel (%p248) target = $region28
        $region27: #{orpo_loss.1} parent=23 // pred_region
          %s251 = sand.u32 %s51, 1
          %s252 = scalar_lea.sflag [#allocation9], %s251
          %s253 = sand.u32 %s51, 1
          %s254 = smul.addr %s253, 16
          %s255 = scalar_lea.vmem [#allocation8], %s254
          %s256 = smul.u32 2, %s25
          %s257 = smul.u32 2, %s26
          %s259 = ssub.s32 256, 256
          %260 = vsyncadd %s252, %s259
          %s261 = smul.addr %s257, 4
          %s262 = sadd.s32 %s27, %s261
          %s263 = smul.addr %s256, 8
          %s264 = sadd.s32 %s262, %s263
          %s265 = smul.addr %s264, 64
          %s266 = scalar_lea.hbm %s0, %s265
          %s267 = sshll.u32 %s255, 4
          %s268 = int_to_ptr.vmem [resolvable:$true] %s267
          %273 = dma.hbm_to_vmem [thread:$0]  %s266, 256, %s268, %s252, 256, 64, 4
        $region28: #{orpo_loss.1} parent=23 // pred_fallthru
          _
        // Predicated region
        $region29: #{orpo_loss.1} parent=23 // pred_check
          %p274 = pneg %p91
        $region30: #{orpo_loss.1} parent=23 // pred_check_branch
          %276 = sbr.rel (%p274) target = $region32
        $region31: #{orpo_loss.1} parent=23 // pred_region
          %s277 = sand.u32 %s81, 1
          %s278 = scalar_lea.sflag [#allocation11], %s277
          %s279 = sand.u32 %s81, 1
          %s280 = smul.addr %s279, 16
          %s281 = scalar_lea.vmem [#allocation10], %s280
          %s282 = smul.u32 2, %s25
          %s283 = smul.u32 2, %s26
          %s285 = ssub.s32 256, 256
          %286 = vsyncadd %s278, %s285
          %s287 = smul.addr %s283, 4
          %s288 = sadd.s32 %s27, %s287
          %s289 = smul.addr %s282, 8
          %s290 = sadd.s32 %s288, %s289
          %s291 = smul.addr %s290, 64
          %s292 = scalar_lea.hbm %s1, %s291
          %s293 = sshll.u32 %s281, 4
          %s294 = int_to_ptr.vmem [resolvable:$true] %s293
          %299 = dma.hbm_to_vmem [thread:$0]  %s292, 256, %s294, %s278, 256, 64, 4
        $region32: #{orpo_loss.1} parent=23 // pred_fallthru
          _
      $region24: #{orpo_loss.1} parent=5 // pred_fallthru
        _
      %p300 = scmp.le.s32.totalorder 1, %s18
      %p301 = scmp.lt.s32.totalorder %s18, 5
      %p302 = pnand %p300, %p301
      %p303 = pneg %p302
      // Predicated region
      $region33: #{orpo_loss.1} parent=5 // pred_check
        _
      $region34: #{orpo_loss.1} parent=5 // pred_check_branch
        %305 = sbr.rel (%p302) target = $region36
      $region35: #{orpo_loss.1} parent=5 // pred_region
        %s306 = ssub.s32 %s18, 1
        %s307 = sand.u32 %s54, 1
        %s308 = scalar_lea.sflag [#allocation9], %s307
        %s309 = sand.u32 %s54, 1
        %s310 = smul.addr %s309, 16
        %s311 = scalar_lea.vmem [#allocation8], %s310
        // Predicated region
        $region37: #{orpo_loss.1} parent=35 // pred_check
          %p312 = pneg %p67
        $region38: #{orpo_loss.1} parent=35 // pred_check_branch
          %314 = sbr.rel (%p312) target = $region40
        $region39: #{orpo_loss.1} parent=35 // pred_region
          %315 = dma.done %s308, 256
        $region40: #{orpo_loss.1} parent=35 // pred_fallthru
          _
        %s316 = sand.u32 %s84, 1
        %s317 = scalar_lea.sflag [#allocation11], %s316
        %s318 = sand.u32 %s84, 1
        %s319 = smul.addr %s318, 16
        %s320 = scalar_lea.vmem [#allocation10], %s319
        // Predicated region
        $region41: #{orpo_loss.1} parent=35 // pred_check
          %p321 = pneg %p97
        $region42: #{orpo_loss.1} parent=35 // pred_check_branch
          %323 = sbr.rel (%p321) target = $region44
        $region43: #{orpo_loss.1} parent=35 // pred_region
          %324 = dma.done %s317, 256
        $region44: #{orpo_loss.1} parent=35 // pred_fallthru
          _
        %s325 = sand.u32 %s54, 1
        %s326 = scalar_lea.sflag [#allocation9], %s325
        %s327 = sand.u32 %s54, 1
        %s328 = smul.addr %s327, 16
        %s329 = scalar_lea.vmem [#allocation8], %s328
        %p330 = pneg %p67
        %p331 = pneg %p64
        %s332 = sand.u32 %s84, 1
        %s333 = scalar_lea.sflag [#allocation11], %s332
        %s334 = sand.u32 %s84, 1
        %s335 = smul.addr %s334, 16
        %s336 = scalar_lea.vmem [#allocation10], %s335
        %p337 = pneg %p97
        %p338 = pneg %p94
        %p339 = scmp.lt.s32.totalorder %s28, 0
        %s340 = scalar_select %p339, %s28, 0
        %p341 = scmp.lt.s32.totalorder %s29, 0
        %s342 = scalar_select %p341, %s29, 0
        %s343 = sadd.s32 %s342, %s340
        %s344 = smul.addr %s343, 2
        %s345 = scalar_lea.vmem %s2, %s344
        %p346 = pneg %p125
        %p347 = pneg %p122
        %p348 = scmp.lt.s32.totalorder %s28, 0
        %s349 = scalar_select %p348, %s28, 0
        %p350 = scmp.lt.s32.totalorder %s29, 0
        %s351 = scalar_select %p350, %s29, 0
        %s352 = sadd.s32 %s351, %s349
        %s353 = smul.addr %s352, 2
        %s354 = scalar_lea.vmem %s3, %s353
        %p355 = pneg %p153
        %p356 = pneg %p150
        %p357 = pneg %p181
        %p358 = pneg %p178
        %p359 = scmp.lt.s32.totalorder %s28, 0
        %s360 = scalar_select %p359, %s28, 0
        %p361 = scmp.lt.s32.totalorder %s29, 0
        %s362 = scalar_select %p361, %s29, 0
        %s363 = sadd.s32 %s362, %s360
        %s364 = smul.addr %s363, 2
        %s365 = scalar_lea.vmem %s4, %s364
        %p366 = pneg %p209
        %p367 = pneg %p206
        %p368 = scmp.lt.s32.totalorder %s28, 0
        %s369 = scalar_select %p368, %s28, 0
        %p370 = scmp.lt.s32.totalorder %s29, 0
        %s371 = scalar_select %p370, %s29, 0
        %s372 = sadd.s32 %s371, %s369
        %s373 = smul.addr %s372, 2
        %s374 = scalar_lea.vmem %s5, %s373
        %s375 = smul.u32 2, %s28
        %s376 = smul.u32 2, %s29
        %s377 = smul.u32 2, %s28
        %s378 = smul.u32 2, %s29
        %p379 = scmp.lt.s32.totalorder %s28, 0
        %s380 = scalar_select %p379, %s28, 0
        %p381 = scmp.lt.s32.totalorder %s29, 0
        %s382 = scalar_select %p381, %s29, 0
        %s383 = sadd.s32 %s382, %s380
        %s384 = smul.addr %s383, 2
        %s385 = scalar_lea.vmem %s2, %s384
        %p386 = scmp.lt.s32.totalorder %s28, 0
        %s387 = scalar_select %p386, %s28, 0
        %p388 = scmp.lt.s32.totalorder %s29, 0
        %s389 = scalar_select %p388, %s29, 0
        %s390 = sadd.s32 %s389, %s387
        %s391 = smul.addr %s390, 2
        %s392 = scalar_lea.vmem %s3, %s391
        %p393 = scmp.lt.s32.totalorder %s28, 0
        %s394 = scalar_select %p393, %s28, 0
        %p395 = scmp.lt.s32.totalorder %s29, 0
        %s396 = scalar_select %p395, %s29, 0
        %s397 = sadd.s32 %s396, %s394
        %s398 = smul.addr %s397, 2
        %s399 = scalar_lea.vmem %s4, %s398
        %p400 = scmp.lt.s32.totalorder %s28, 0
        %s401 = scalar_select %p400, %s28, 0
        %p402 = scmp.lt.s32.totalorder %s29, 0
        %s403 = scalar_select %p402, %s29, 0
        %s404 = sadd.s32 %s403, %s401
        %s405 = smul.addr %s404, 2
        %s406 = scalar_lea.vmem %s5, %s405
        %s407 = smul.u32 %s30, 128
        %v408 = vlaneseq
        %v409 = vand.u32 %v408, 127
        %p410 = scmp.eq.s32.totalorder %s30, 0
        // Predicated region
        $region45: #{orpo_loss.1} parent=35 // pred_check
          %p411 = pneg %p410
        $region46: #{orpo_loss.1} parent=35 // pred_check_branch
          %413 = sbr.rel (%p411) target = $region48
        $region47: #{orpo_loss.1} parent=35 // pred_region
          %vm414 = vcmask 123904
          %415 = vst.msk [vmem:[#allocation2] sm:$0x3] %vm414, -1e+30
          %416 = vst.msk [vmem:[#allocation3] sm:$0x3] %vm414, 0.0
          %417 = vst.msk [vmem:[#allocation4] sm:$0x3] %vm414, 0.0
        $region48: #{orpo_loss.1} parent=35 // pred_fallthru
          _
        %v418 = vld [vmem:[%s385] sm:$0x3]
        %v419 = vld [vmem:[%s311] sm:$0xf]
        %v420 = vld [vmem:[%s311 + $0x4] sm:$0xf]
        %v421 = vld [vmem:[%s311 + $0x8] sm:$0xf]
        %v422 = vld [vmem:[%s311 + $0xc] sm:$0xf]
        %v423 = vunpack.c.l.bf16 %v419
        %v424 = vunpack.c.l.bf16 %v420
        %v425 = vunpack.c.l.bf16 %v421
        %v426 = vunpack.c.l.bf16 %v422
        %v427 = vld [vmem:[#allocation2] sm:$0x3]
        %428 = vmax.xlane.f32.xlu0 %v423
        %v429 = vpop.xlane.xlu0 %428
        %430 = vmax.xlane.f32.xlu0 %v424
        %v431 = vpop.xlane.xlu0 %430
        %432 = vmax.xlane.f32.xlu0 %v425
        %v433 = vpop.xlane.xlu0 %432
        %434 = vmax.xlane.f32.xlu0 %v426
        %v435 = vpop.xlane.xlu0 %434
        %v440 = vlaneseq
        %v441 = vshrl.u32 %v440, 7
        %v442 = vsub.s32 %v409, %v441
        %v443 = vrot.slane %v429, %v442
        %v444 = vadd.s32 %v409, 4294967288
        %v445 = vlaneseq
        %v446 = vshrl.u32 %v445, 7
        %v447 = vsub.s32 %v444, %v446
        %v448 = vrot.slane %v431, %v447
        %vm449 = vcmask 130112
        %v450 = vsel %vm449, %v448, %v443
        %v451 = vlaneseq
        %v452 = vshrl.u32 %v451, 7
        %v453 = vsub.s32 %v409, %v452
        %v454 = vrot.slane %v433, %v453
        %v455 = vlaneseq
        %v456 = vshrl.u32 %v455, 7
        %v457 = vsub.s32 %v444, %v456
        %v458 = vrot.slane %v435, %v457
        %v459 = vsel %vm449, %v458, %v454
        %vm460 = vcmask 1041409
        %v461 = vsel %vm460, %v459, %v450
        %v463 = vmax.f32 %v427, %v461
        %v464 = vsub.f32 %v427, %v463
        %v465 = vmul.f32 %v464, 1.442695
        %v466 = vpow.pop %v465
        %v467 = vld [vmem:[#allocation3] sm:$0x3]
        %v468 = vmul.f32 %v466, %v467
        %v469 = vlaneseq
        %v470 = vshrl.u32 %v469, 7
        %v471 = vsub.s32 0, %v470
        %v472 = vrot.slane %v463, %v471
        %474 = vbcast.lane.b32.xlu0 %v472, 256
        %v475 = vpop.permute.xlu0 %474
        %s477 = sor.u32 256, 8
        %478 = vbcast.lane.b32.xlu0 %v472, %s477
        %v479 = vpop.permute.xlu0 %478
        %v480 = vlaneseq
        %v481 = vshrl.u32 %v480, 7
        %v482 = vsub.s32 1, %v481
        %v483 = vrot.slane %v463, %v482
        %485 = vbcast.lane.b32.xlu0 %v483, 256
        %v486 = vpop.permute.xlu0 %485
        %s488 = sor.u32 256, 8
        %489 = vbcast.lane.b32.xlu0 %v483, %s488
        %v490 = vpop.permute.xlu0 %489
        %v491 = vsub.f32 %v423, %v475
        %v492 = vsub.f32 %v424, %v479
        %v493 = vsub.f32 %v425, %v486
        %v494 = vsub.f32 %v426, %v490
        %v495 = vmul.f32 %v491, 1.442695
        %v496 = vpow.pop %v495
        %v497 = vmul.f32 %v492, 1.442695
        %v498 = vpow.pop %v497
        %v499 = vmul.f32 %v493, 1.442695
        %v500 = vpow.pop %v499
        %v501 = vmul.f32 %v494, 1.442695
        %v502 = vpow.pop %v501
        %503 = vadd.xlane.f32.xlu0 %v496
        %v504 = vpop.xlane.xlu0 %503
        %505 = vadd.xlane.f32.xlu0 %v498
        %v506 = vpop.xlane.xlu0 %505
        %507 = vadd.xlane.f32.xlu0 %v500
        %v508 = vpop.xlane.xlu0 %507
        %509 = vadd.xlane.f32.xlu0 %v502
        %v510 = vpop.xlane.xlu0 %509
        %v515 = vlaneseq
        %v516 = vshrl.u32 %v515, 7
        %v517 = vsub.s32 %v409, %v516
        %v518 = vrot.slane %v504, %v517
        %v519 = vlaneseq
        %v520 = vshrl.u32 %v519, 7
        %v521 = vsub.s32 %v444, %v520
        %v522 = vrot.slane %v506, %v521
        %v523 = vsel %vm449, %v522, %v518
        %v524 = vlaneseq
        %v525 = vshrl.u32 %v524, 7
        %v526 = vsub.s32 %v409, %v525
        %v527 = vrot.slane %v508, %v526
        %v528 = vlaneseq
        %v529 = vshrl.u32 %v528, 7
        %v530 = vsub.s32 %v444, %v529
        %v531 = vrot.slane %v510, %v530
        %v532 = vsel %vm449, %v531, %v527
        %v533 = vsel %vm460, %v532, %v523
        %v535 = vadd.f32 %v468, %v533
        %vm536 = vcmask 123904
        %537 = vst.msk [vmem:[#allocation3] sm:$0x3] %vm536, %v535
        %538 = vst.msk [vmem:[#allocation2] sm:$0x3] %vm536, %v463
        %v539 = vstv %s407
        %v540 = vsub.s32 %v418, %v539
        %v541 = vlaneseq
        %v542 = vshrl.u32 %v541, 7
        %v543 = vsub.s32 0, %v542
        %v544 = vrot.slane %v540, %v543
        %546 = vbcast.lane.b32.xlu0 %v544, 256
        %v547 = vpop.permute.xlu0 %546
        %s549 = sor.u32 256, 8
        %550 = vbcast.lane.b32.xlu0 %v544, %s549
        %v551 = vpop.permute.xlu0 %550
        %v552 = vlaneseq
        %v553 = vshrl.u32 %v552, 7
        %v554 = vsub.s32 1, %v553
        %v555 = vrot.slane %v540, %v554
        %557 = vbcast.lane.b32.xlu0 %v555, 256
        %v558 = vpop.permute.xlu0 %557
        %s560 = sor.u32 256, 8
        %561 = vbcast.lane.b32.xlu0 %v555, %s560
        %v562 = vpop.permute.xlu0 %561
        %vm563 = vcmp.eq.s32.totalorder %v409, %v547
        %vm564 = vcmp.eq.s32.totalorder %v409, %v551
        %vm565 = vcmp.eq.s32.totalorder %v409, %v558
        %vm566 = vcmp.eq.s32.totalorder %v409, %v562
        %v567 = vld [vmem:[#allocation4] sm:$0x3]
        %v568 = vsel %vm563, %v423, 0.0
        %v569 = vsel %vm564, %v424, 0.0
        %v570 = vsel %vm565, %v425, 0.0
        %v571 = vsel %vm566, %v426, 0.0
        %572 = vadd.xlane.f32.xlu0 %v568
        %v573 = vpop.xlane.xlu0 %572
        %574 = vadd.xlane.f32.xlu0 %v569
        %v575 = vpop.xlane.xlu0 %574
        %576 = vadd.xlane.f32.xlu0 %v570
        %v577 = vpop.xlane.xlu0 %576
        %578 = vadd.xlane.f32.xlu0 %v571
        %v579 = vpop.xlane.xlu0 %578
        %v584 = vlaneseq
        %v585 = vshrl.u32 %v584, 7
        %v586 = vsub.s32 %v409, %v585
        %v587 = vrot.slane %v573, %v586
        %v588 = vlaneseq
        %v589 = vshrl.u32 %v588, 7
        %v590 = vsub.s32 %v444, %v589
        %v591 = vrot.slane %v575, %v590
        %v592 = vsel %vm449, %v591, %v587
        %v593 = vlaneseq
        %v594 = vshrl.u32 %v593, 7
        %v595 = vsub.s32 %v409, %v594
        %v596 = vrot.slane %v577, %v595
        %v597 = vlaneseq
        %v598 = vshrl.u32 %v597, 7
        %v599 = vsub.s32 %v444, %v598
        %v600 = vrot.slane %v579, %v599
        %v601 = vsel %vm449, %v600, %v596
        %v602 = vsel %vm460, %v601, %v592
        %v604 = vadd.f32 %v567, %v602
        %605 = vst.msk [vmem:[#allocation4] sm:$0x3] %vm536, %v604
        %p606 = scmp.eq.s32.totalorder %s30, 3
        // Predicated region
        $region49: #{orpo_loss.1} parent=35 // pred_check
          %p607 = pneg %p606
        $region50: #{orpo_loss.1} parent=35 // pred_check_branch
          %609 = sbr.rel (%p607) target = $region52
        $region51: #{orpo_loss.1} parent=35 // pred_region
          %v610 = vld [vmem:[#allocation2] sm:$0x3]
          %v611 = vld [vmem:[#allocation3] sm:$0x3]
          %v612 = vlog2.pop %v611
          %v613 = vmul.f32 %v612, 0.6931472
          %v614 = vadd.f32 %v610, %v613
          %vm615 = vcmp.ne.s32.totalorder %v418, 4294967196
          %v616 = vsel %vm615, 1, 0
          %v617 = vcvt.s32.f32 %v616
          %v618 = vld [vmem:[#allocation4] sm:$0x3]
          %v619 = vsub.f32 %v618, %v614
          %v620 = vmul.f32 %v619, %v617
          %621 = vst.msk [vmem:[%s399] sm:$0x3] %vm536, %v620
        $region52: #{orpo_loss.1} parent=35 // pred_fallthru
          _
        // Predicated region
        $region53: #{orpo_loss.1} parent=35 // pred_check
          %p622 = pneg %p410
        $region54: #{orpo_loss.1} parent=35 // pred_check_branch
          %624 = sbr.rel (%p622) target = $region56
        $region55: #{orpo_loss.1} parent=35 // pred_region
          %625 = vst.msk [vmem:[#allocation5] sm:$0x3] %vm536, -1e+30
          %626 = vst.msk [vmem:[#allocation6] sm:$0x3] %vm536, 0.0
          %627 = vst.msk [vmem:[#allocation7] sm:$0x3] %vm536, 0.0
        $region56: #{orpo_loss.1} parent=35 // pred_fallthru
          _
        %v628 = vld [vmem:[%s392] sm:$0x3]
        %v629 = vld [vmem:[%s320] sm:$0xf]
        %v630 = vld [vmem:[%s320 + $0x4] sm:$0xf]
        %v631 = vld [vmem:[%s320 + $0x8] sm:$0xf]
        %v632 = vld [vmem:[%s320 + $0xc] sm:$0xf]
        %v633 = vunpack.c.l.bf16 %v629
        %v634 = vunpack.c.l.bf16 %v630
        %v635 = vunpack.c.l.bf16 %v631
        %v636 = vunpack.c.l.bf16 %v632
        %v637 = vld [vmem:[#allocation5] sm:$0x3]
        %638 = vmax.xlane.f32.xlu0 %v633
        %v639 = vpop.xlane.xlu0 %638
        %640 = vmax.xlane.f32.xlu0 %v634
        %v641 = vpop.xlane.xlu0 %640
        %642 = vmax.xlane.f32.xlu0 %v635
        %v643 = vpop.xlane.xlu0 %642
        %644 = vmax.xlane.f32.xlu0 %v636
        %v645 = vpop.xlane.xlu0 %644
        %v650 = vlaneseq
        %v651 = vshrl.u32 %v650, 7
        %v652 = vsub.s32 %v409, %v651
        %v653 = vrot.slane %v639, %v652
        %v654 = vlaneseq
        %v655 = vshrl.u32 %v654, 7
        %v656 = vsub.s32 %v444, %v655
        %v657 = vrot.slane %v641, %v656
        %v658 = vsel %vm449, %v657, %v653
        %v659 = vlaneseq
        %v660 = vshrl.u32 %v659, 7
        %v661 = vsub.s32 %v409, %v660
        %v662 = vrot.slane %v643, %v661
        %v663 = vlaneseq
        %v664 = vshrl.u32 %v663, 7
        %v665 = vsub.s32 %v444, %v664
        %v666 = vrot.slane %v645, %v665
        %v667 = vsel %vm449, %v666, %v662
        %v668 = vsel %vm460, %v667, %v658
        %v670 = vmax.f32 %v637, %v668
        %v671 = vsub.f32 %v637, %v670
        %v672 = vmul.f32 %v671, 1.442695
        %v673 = vpow.pop %v672
        %v674 = vld [vmem:[#allocation6] sm:$0x3]
        %v675 = vmul.f32 %v673, %v674
        %v676 = vlaneseq
        %v677 = vshrl.u32 %v676, 7
        %v678 = vsub.s32 0, %v677
        %v679 = vrot.slane %v670, %v678
        %681 = vbcast.lane.b32.xlu0 %v679, 256
        %v682 = vpop.permute.xlu0 %681
        %s684 = sor.u32 256, 8
        %685 = vbcast.lane.b32.xlu0 %v679, %s684
        %v686 = vpop.permute.xlu0 %685
        %v687 = vlaneseq
        %v688 = vshrl.u32 %v687, 7
        %v689 = vsub.s32 1, %v688
        %v690 = vrot.slane %v670, %v689
        %692 = vbcast.lane.b32.xlu0 %v690, 256
        %v693 = vpop.permute.xlu0 %692
        %s695 = sor.u32 256, 8
        %696 = vbcast.lane.b32.xlu0 %v690, %s695
        %v697 = vpop.permute.xlu0 %696
        %v698 = vsub.f32 %v633, %v682
        %v699 = vsub.f32 %v634, %v686
        %v700 = vsub.f32 %v635, %v693
        %v701 = vsub.f32 %v636, %v697
        %v702 = vmul.f32 %v698, 1.442695
        %v703 = vpow.pop %v702
        %v704 = vmul.f32 %v699, 1.442695
        %v705 = vpow.pop %v704
        %v706 = vmul.f32 %v700, 1.442695
        %v707 = vpow.pop %v706
        %v708 = vmul.f32 %v701, 1.442695
        %v709 = vpow.pop %v708
        %710 = vadd.xlane.f32.xlu0 %v703
        %v711 = vpop.xlane.xlu0 %710
        %712 = vadd.xlane.f32.xlu0 %v705
        %v713 = vpop.xlane.xlu0 %712
        %714 = vadd.xlane.f32.xlu0 %v707
        %v715 = vpop.xlane.xlu0 %714
        %716 = vadd.xlane.f32.xlu0 %v709
        %v717 = vpop.xlane.xlu0 %716
        %v722 = vlaneseq
        %v723 = vshrl.u32 %v722, 7
        %v724 = vsub.s32 %v409, %v723
        %v725 = vrot.slane %v711, %v724
        %v726 = vlaneseq
        %v727 = vshrl.u32 %v726, 7
        %v728 = vsub.s32 %v444, %v727
        %v729 = vrot.slane %v713, %v728
        %v730 = vsel %vm449, %v729, %v725
        %v731 = vlaneseq
        %v732 = vshrl.u32 %v731, 7
        %v733 = vsub.s32 %v409, %v732
        %v734 = vrot.slane %v715, %v733
        %v735 = vlaneseq
        %v736 = vshrl.u32 %v735, 7
        %v737 = vsub.s32 %v444, %v736
        %v738 = vrot.slane %v717, %v737
        %v739 = vsel %vm449, %v738, %v734
        %v740 = vsel %vm460, %v739, %v730
        %v742 = vadd.f32 %v675, %v740
        %743 = vst.msk [vmem:[#allocation6] sm:$0x3] %vm536, %v742
        %744 = vst.msk [vmem:[#allocation5] sm:$0x3] %vm536, %v670
        %v745 = vsub.s32 %v628, %v539
        %v746 = vlaneseq
        %v747 = vshrl.u32 %v746, 7
        %v748 = vsub.s32 0, %v747
        %v749 = vrot.slane %v745, %v748
        %751 = vbcast.lane.b32.xlu0 %v749, 256
        %v752 = vpop.permute.xlu0 %751
        %s754 = sor.u32 256, 8
        %755 = vbcast.lane.b32.xlu0 %v749, %s754
        %v756 = vpop.permute.xlu0 %755
        %v757 = vlaneseq
        %v758 = vshrl.u32 %v757, 7
        %v759 = vsub.s32 1, %v758
        %v760 = vrot.slane %v745, %v759
        %762 = vbcast.lane.b32.xlu0 %v760, 256
        %v763 = vpop.permute.xlu0 %762
        %s765 = sor.u32 256, 8
        %766 = vbcast.lane.b32.xlu0 %v760, %s765
        %v767 = vpop.permute.xlu0 %766
        %vm768 = vcmp.eq.s32.totalorder %v409, %v752
        %vm769 = vcmp.eq.s32.totalorder %v409, %v756
        %vm770 = vcmp.eq.s32.totalorder %v409, %v763
        %vm771 = vcmp.eq.s32.totalorder %v409, %v767
        %v772 = vld [vmem:[#allocation7] sm:$0x3]
        %v773 = vsel %vm768, %v633, 0.0
        %v774 = vsel %vm769, %v634, 0.0
        %v775 = vsel %vm770, %v635, 0.0
        %v776 = vsel %vm771, %v636, 0.0
        %777 = vadd.xlane.f32.xlu0 %v773
        %v778 = vpop.xlane.xlu0 %777
        %779 = vadd.xlane.f32.xlu0 %v774
        %v780 = vpop.xlane.xlu0 %779
        %781 = vadd.xlane.f32.xlu0 %v775
        %v782 = vpop.xlane.xlu0 %781
        %783 = vadd.xlane.f32.xlu0 %v776
        %v784 = vpop.xlane.xlu0 %783
        %v789 = vlaneseq
        %v790 = vshrl.u32 %v789, 7
        %v791 = vsub.s32 %v409, %v790
        %v792 = vrot.slane %v778, %v791
        %v793 = vlaneseq
        %v794 = vshrl.u32 %v793, 7
        %v795 = vsub.s32 %v444, %v794
        %v796 = vrot.slane %v780, %v795
        %v797 = vsel %vm449, %v796, %v792
        %v798 = vlaneseq
        %v799 = vshrl.u32 %v798, 7
        %v800 = vsub.s32 %v409, %v799
        %v801 = vrot.slane %v782, %v800
        %v802 = vlaneseq
        %v803 = vshrl.u32 %v802, 7
        %v804 = vsub.s32 %v444, %v803
        %v805 = vrot.slane %v784, %v804
        %v806 = vsel %vm449, %v805, %v801
        %v807 = vsel %vm460, %v806, %v797
        %v809 = vadd.f32 %v772, %v807
        %810 = vst.msk [vmem:[#allocation7] sm:$0x3] %vm536, %v809
        // Predicated region
        $region57: #{orpo_loss.1} parent=35 // pred_check
          %p811 = pneg %p606
        $region58: #{orpo_loss.1} parent=35 // pred_check_branch
          %813 = sbr.rel (%p811) target = $region60
        $region59: #{orpo_loss.1} parent=35 // pred_region
          %v814 = vld [vmem:[#allocation5] sm:$0x3]
          %v815 = vld [vmem:[#allocation6] sm:$0x3]
          %v816 = vlog2.pop %v815
          %v817 = vmul.f32 %v816, 0.6931472
          %v818 = vadd.f32 %v814, %v817
          %vm819 = vcmp.ne.s32.totalorder %v628, 4294967196
          %v820 = vsel %vm819, 1, 0
          %v821 = vcvt.s32.f32 %v820
          %v822 = vld [vmem:[#allocation7] sm:$0x3]
          %v823 = vsub.f32 %v822, %v818
          %v824 = vmul.f32 %v823, %v821
          %825 = vst.msk [vmem:[%s406] sm:$0x3] %vm536, %v824
        $region60: #{orpo_loss.1} parent=35 // pred_fallthru
          _
        %p826 = scmp.lt.s32.totalorder %s28, 0
        %s827 = scalar_select %p826, %s28, 0
        %p828 = scmp.lt.s32.totalorder %s29, 0
        %s829 = scalar_select %p828, %s29, 0
        %s830 = sadd.s32 %s829, %s827
        %s831 = smul.addr %s830, 2
        %s832 = scalar_lea.vmem %s4, %s831
        %p833 = scmp.lt.s32.totalorder %s28, 0
        %s834 = scalar_select %p833, %s28, 0
        %p835 = scmp.lt.s32.totalorder %s29, 0
        %s836 = scalar_select %p835, %s29, 0
        %s837 = sadd.s32 %s836, %s834
        %s838 = smul.addr %s837, 2
        %s839 = scalar_lea.vmem %s5, %s838
        // Predicated region
        $region61: #{orpo_loss.1} parent=35 // pred_check
          %p840 = pneg %p178
        $region62: #{orpo_loss.1} parent=35 // pred_check_branch
          %842 = sbr.rel (%p840) target = $region64
        $region63: #{orpo_loss.1} parent=35 // pred_region
          _
        $region64: #{orpo_loss.1} parent=35 // pred_fallthru
          _
        // Predicated region
        $region65: #{orpo_loss.1} parent=35 // pred_check
          %p843 = pneg %p206
        $region66: #{orpo_loss.1} parent=35 // pred_check_branch
          %845 = sbr.rel (%p843) target = $region68
        $region67: #{orpo_loss.1} parent=35 // pred_region
          _
        $region68: #{orpo_loss.1} parent=35 // pred_fallthru
          _
        // Predicated region
        $region69: #{orpo_loss.1} parent=35 // pred_check
          %p846 = pneg %p178
        $region70: #{orpo_loss.1} parent=35 // pred_check_branch
          %848 = sbr.rel (%p846) target = $region72
        $region71: #{orpo_loss.1} parent=35 // pred_region
          %p849 = scmp.lt.s32.totalorder %s28, 0
          %s850 = scalar_select %p849, %s28, 0
          %p851 = scmp.lt.s32.totalorder %s29, 0
          %s852 = scalar_select %p851, %s29, 0
          %s853 = sadd.s32 %s852, %s850
          %s854 = smul.addr %s853, 2
          %s855 = scalar_lea.vmem %s4, %s854
        $region72: #{orpo_loss.1} parent=35 // pred_fallthru
          _
        // Predicated region
        $region73: #{orpo_loss.1} parent=35 // pred_check
          %p856 = pneg %p206
        $region74: #{orpo_loss.1} parent=35 // pred_check_branch
          %858 = sbr.rel (%p856) target = $region76
        $region75: #{orpo_loss.1} parent=35 // pred_region
          %p859 = scmp.lt.s32.totalorder %s28, 0
          %s860 = scalar_select %p859, %s28, 0
          %p861 = scmp.lt.s32.totalorder %s29, 0
          %s862 = scalar_select %p861, %s29, 0
          %s863 = sadd.s32 %s862, %s860
          %s864 = smul.addr %s863, 2
          %s865 = scalar_lea.vmem %s5, %s864
        $region76: #{orpo_loss.1} parent=35 // pred_fallthru
          _
      $region36: #{orpo_loss.1} parent=5 // pred_fallthru
        _
      %p866 = scmp.le.s32.totalorder 2, %s18
      // Predicated region
      $region77: #{orpo_loss.1} parent=5 // pred_check
        %p867 = pneg %p866
      $region78: #{orpo_loss.1} parent=5 // pred_check_branch
        %869 = sbr.rel (%p867) target = $region80
      $region79: #{orpo_loss.1} parent=5 // pred_region
        %s870 = ssub.s32 %s18, 2
      $region80: #{orpo_loss.1} parent=5 // pred_fallthru
        _
    $region6: #{orpo_loss.1} parent=1 // loop_footer
      %s22 = sadd.s32 1, %s18
    $region7: #{orpo_loss.1} parent=1 // loop_footer_branch
      %17 = sbr.rel target = $region3
    $region8: #{orpo_loss.1} parent=1 // loop_exit
      _
    %871 = vsyncpa [#allocation9], 1
    %s872 = scalar_lea.sflag [#allocation9], 1
    %873 = vsyncpa %s872, 1
    %874 = vsyncpa [#allocation11], 1
    %s875 = scalar_lea.sflag [#allocation11], 1
    %876 = vsyncpa %s875, 1

</llo_original>
